<compile_context>
chip_gen: v6e
topology: v6e:2x2x1
jax: 0.10.0
libtpu: 0.0.40
codegen_flags: <defaults>
</compile_context>

<pallas_src>
import jax
import jax.numpy as jnp
from jax import lax
from jax.experimental import pallas as pl
from jax.experimental.pallas import tpu as pltpu


# ---------------------------------------------------------------------------
# Kernel 1: fused bank-gather + token-mean pooling.
# The gather itself happens in the index_map (scalar-prefetched indices); the
# body reduces the (1, T, D) row to (1, 1, D) on the VPU/XLU while the next
# row's DMA is in flight, so only pooled features ever hit HBM.
# ---------------------------------------------------------------------------
def _gather_pool_kernel(idx_ref, bank_ref, out_ref):
    del idx_ref  # consumed by the index_map
    out_ref[...] = jnp.mean(bank_ref[...], axis=1, keepdims=True)


def gather_pool_bank(bank, indexs):
    """bank: [N, T, D], indexs: [B] int32 -> token-mean pooled features [B, D]."""
    N, T, D = bank.shape
    B = indexs.shape[0]
    pooled = pl.pallas_call(
        _gather_pool_kernel,
        out_shape=jax.ShapeDtypeStruct((B, 1, D), bank.dtype),
        grid_spec=pltpu.PrefetchScalarGridSpec(
            num_scalar_prefetch=1,
            grid=(B,),
            in_specs=[pl.BlockSpec((1, T, D), lambda i, idx: (idx[i], 0, 0))],
            # (1, 1, D) block: last two dims equal the full array dims -> no
            # sublane-partial stores; lane-dense D-wide writes.
            out_specs=pl.BlockSpec((1, 1, D), lambda i, idx: (i, 0, 0)),
        ),
        compiler_params=pltpu.CompilerParams(
            # Each step writes a disjoint output row -> safe to shard across
            # TensorCores on v7x; harmless on v5e/v6e.
            dimension_semantics=("parallel",)),
    )(indexs, bank)
    return pooled.reshape(B, D)


# ---------------------------------------------------------------------------
# Kernel 2: fused L2-normalize + InfoNCE loss.
#   q, t: [B, D];  logits = (q_n @ t_n.T) / tau;  labels = arange(B)
#   loss = mean_i( logsumexp(logits_i) - logits_i[i] )
# Whole problem fits in VMEM at module-realistic B, so a single gridless call:
# MXU matmul (NT form), VPU/XLU row reductions, EUP rsqrt, scalar -> SMEM.
# ---------------------------------------------------------------------------
def _make_norm_infonce_kernel(tau):
    inv_tau = float(1.0 / tau)
    eps = 1e-12

    def kernel(q_ref, t_ref, loss_ref):
        q = q_ref[...].astype(jnp.float32)                      # [B, D]
        t = t_ref[...].astype(jnp.float32)                      # [B, D]
        # fused L2 normalization (rsqrt runs on the EUP slot)
        q = q * lax.rsqrt(jnp.sum(q * q, axis=-1, keepdims=True) + eps)
        t = t * lax.rsqrt(jnp.sum(t * t, axis=-1, keepdims=True) + eps)
        # logits = q @ t.T / tau  — contract last dims, no explicit transpose
        logits = lax.dot_general(
            q, t,
            dimension_numbers=(((1,), (1,)), ((), ())),
            preferred_element_type=jnp.float32) * inv_tau       # [B, B]
        # stable logsumexp over rows
        m = jnp.max(logits, axis=-1, keepdims=True)             # [B, 1]
        lse = m + jnp.log(jnp.sum(jnp.exp(logits - m), axis=-1, keepdims=True))
        # labels = arange(B)  =>  logits[i, i] = <q_i, t_i> / tau
        diag = jnp.sum(q * t, axis=-1, keepdims=True) * inv_tau  # [B, 1]
        loss_ref[0, 0] = jnp.mean(lse - diag)

    return kernel


def infonce_loss_pallas(query_features, target_features, tau=0.01):
    """query/target: [B, D] (unnormalized pooled feats) -> scalar f32 CE loss."""
    out = pl.pallas_call(
        _make_norm_infonce_kernel(tau),
        out_shape=jax.ShapeDtypeStruct((1, 1), jnp.float32),
        in_specs=[pl.BlockSpec(memory_space=pltpu.MemorySpace.VMEM),
                  pl.BlockSpec(memory_space=pltpu.MemorySpace.VMEM)],
        out_specs=pl.BlockSpec(memory_space=pltpu.MemorySpace.SMEM),
    )(query_features, target_features)
    return out[0, 0]


# ---------------------------------------------------------------------------
# CIRPlus wrapper (synthetic, deterministic "banks" stand in for the encoded
# BLIP features the original module stores in self.refer_bank / target_bank).
# ---------------------------------------------------------------------------
class CIRPlusPallas:
    def __init__(self, num_images=16, num_tokens=32, embed_dim=256,
                 tau=0.07, plus=False, seed=0):
        self.tau = tau
        self.plus = plus
        k1, k2 = jax.random.split(jax.random.PRNGKey(seed))
        # shapes mirror extract_bank_features: target_bank (N, 32, 256).
        # (For v6e/v5e, bf16 banks + f32-accumulating MXU would halve gather
        # traffic; kept f32 here to match the torch module's float banks.)
        self.target_bank = jax.random.normal(
            k1, (num_images, num_tokens, embed_dim), jnp.float32)
        self.refer_bank = jax.random.normal(
            k2, (num_images, num_tokens, embed_dim), jnp.float32)

    def forward(self, indexs, target_indexs, refer_indexs):
        # TODO(synk): blip_model.forward_stage2 (pretrained BLIP-2 Q-Former text
        # fusion) is an external checkpoint network with no Pallas equivalent;
        # we implement the bank gathers (fused with pooling) plus the module's
        # infonce_loss contrastive objective.
        sel = refer_indexs if self.plus else indexs
        q = gather_pool_bank(self.refer_bank, sel)                 # Pallas (gather+pool)
        t = gather_pool_bank(self.target_bank, target_indexs)      # Pallas (gather+pool)
        return infonce_loss_pallas(q, t, tau=self.tau)             # Pallas (norm+InfoNCE)


if __name__ == "__main__":
    model = CIRPlusPallas(num_images=16, num_tokens=32, embed_dim=256,
                          tau=0.07, plus=False, seed=0)

    # small deterministic example batch (B=4)
    indexs        = jnp.array([0, 3, 5, 7], dtype=jnp.int32)
    target_indexs = jnp.array([1, 4, 6, 9], dtype=jnp.int32)
    refer_indexs  = jnp.array([2, 8, 10, 12], dtype=jnp.int32)

    loss = model.forward(indexs, target_indexs, refer_indexs)
    jax.block_until_ready(loss)
    assert jnp.isfinite(loss), "loss is not finite"
    print("KERNEL_OK")
</pallas_src>

<mosaic_0001>
module attributes {stable_mosaic.version = 11 : i64} {
  func.func @_gather_pool_kernel(%arg0: i32, %arg1: memref<4xi32, #tpu.memory_space<smem>>, %arg2: memref<1x32x256xf32, #tpu.memory_space<vmem>>, %arg3: memref<1x1x256xf32, #tpu.memory_space<vmem>>) attributes {dimension_semantics = [#tpu.dimension_semantics<parallel>], iteration_bounds = array<i64: 4>, scalar_prefetch = 1 : i64, scratch_operands = 0 : i64, tpu.core_type = #tpu.core_type<tc>, window_params = [{transform_indices = @transform_0, window_bounds = array<i64: 1, 32, 256>}, {transform_indices = @transform_1, window_bounds = array<i64: 1, 1, 256>}]} {
    %c0 = arith.constant 0 : index
    %c0_0 = arith.constant 0 : index
    %c0_1 = arith.constant 0 : index
    %0 = vector.load %arg2[%c0, %c0_0, %c0_1] : memref<1x32x256xf32, #tpu.memory_space<vmem>>, vector<1x32x256xf32>
    %cst = arith.constant dense<0.000000e+00> : vector<1x256xf32>
    %1 = vector.multi_reduction <add>, %0, %cst [1] : vector<1x32x256xf32> to vector<1x256xf32>
    %2 = vector.shape_cast %1 : vector<1x256xf32> to vector<1x1x256xf32>
    %cst_2 = arith.constant 3.200000e+01 : f32
    %3 = vector.broadcast %cst_2 : f32 to vector<1x1x256xf32>
    %4 = arith.divf %2, %3 : vector<1x1x256xf32>
    %c0_3 = arith.constant 0 : index
    %c0_4 = arith.constant 0 : index
    %c0_5 = arith.constant 0 : index
    %5 = vector.load %arg3[%c0_3, %c0_4, %c0_5] : memref<1x1x256xf32, #tpu.memory_space<vmem>>, vector<1x1x256xf32>
    tpu.vector_store %arg3[%c0_3, %c0_4, %c0_5], %4 {strides = array<i32>} : memref<1x1x256xf32, #tpu.memory_space<vmem>>, vector<1x1x256xf32>,
    return
  }
  func.func @transform_0(%arg0: i32, %arg1: memref<4xi32, #tpu.memory_space<smem>>) -> (i32, i32, i32) {
    %0 = arith.index_cast %arg0 : i32 to index
    %1 = memref.load %arg1[%0] : memref<4xi32, #tpu.memory_space<smem>>
    %c0_i32 = arith.constant 0 : i32
    %c0_i32_0 = arith.constant 0 : i32
    %c0_i32_1 = arith.constant 0 : i32
    return %1, %c0_i32, %c0_i32_0 : i32, i32, i32
  }
  func.func @transform_1(%arg0: i32, %arg1: memref<4xi32, #tpu.memory_space<smem>>) -> (i32, i32, i32) {
    %c0_i32 = arith.constant 0 : i32
    %c0_i32_0 = arith.constant 0 : i32
    %c0_i32_1 = arith.constant 0 : i32
    return %arg0, %c0_i32, %c0_i32_0 : i32, i32, i32
  }
}

</mosaic_0001>

<llo_original>
// kernel: tpu_custom_call.1
$region0: #{tpu_custom_call.1}
  #allocation0 [shape = 'u32[]', space=smem, size = 0x4, offset = 0x4, fixed_abs, tag = 'smem constant byte address 0x4 - core index']
  #allocation1 [shape = 'u32[144,128]{1,0:T(1,128)}', space=vmem, size = 0x12000, scoped, tag = 'internal scratch']
  #allocation2 [shape = 's32[1]{0}', space=sflag, size = 0x4, scoped, tag = 'scoped memory for tpu_custom_call.1']
  #allocation3 [shape = 'u8[512]{0}', space=smem, size = 0x200, scoped, tag = 'prefetched SMEM operand 0']
  %s0 = inlined_call_operand.hbm [shape: s32[4], index: 0, kind: input, shape index: {}]
  %s1 = inlined_call_operand.hbm [shape: f32[16,32,256], index: 1, kind: input, shape index: {}]
  %s2 = inlined_call_operand.hbm [shape: f32[4,1,256], index: 2, kind: output, shape index: {}]
  %s3 = sld [smem:[#allocation0]]
  $region41: #{tpu_custom_call.1} parent=0
    _
  %s5 = ssub.s32 1, %s3
  %s6 = scalar_select 0, %s5, %s3
  %8 = dma.hbm_to_smem %s0, 16, [#allocation3], [#allocation2]
  %9 = dma.done [#allocation2], 16
  %10 = sfence
  $region1: #{tpu_custom_call.1} parent=0
    #allocation4 [shape = 'u8[65536]{0}', space=vmem, size = 0x10000, scoped, tag = 'input window, operand 1']
    #allocation5 [shape = 's32[2]{0}', space=sflag, size = 0x8, scoped, tag = 'scoped memory for tpu_custom_call.1']
    #allocation6 [shape = 's32[2]{0}', space=sflag, size = 0x8, scoped, tag = 'scoped memory for tpu_custom_call.1']
    #allocation7 [shape = 'u8[2048]{0}', space=vmem, size = 0x800, scoped, tag = 'output window, operand 0']
    %11 = vsyncpa [#allocation5], 0
    %s12 = scalar_lea.sflag [#allocation5], 1
    %13 = vsyncpa %s12, 0
    %14 = vsyncpa [#allocation6], 0
    %s15 = scalar_lea.sflag [#allocation6], 1
    %16 = vsyncpa %s15, 0
    loop: start=0, step=1, limit=6
    $region2: #{tpu_custom_call.1} parent=1 // loop_pre_header
      _
    $region3: #{tpu_custom_call.1} parent=1 // loop_header
      %s18 = sphi 0, %s22
      %p19 = scmp.ge.s32.totalorder %s18, 6
      %s30 = sphi 0, %s32
      %s33 = sphi 0, %s30
      %s34 = sphi 0, %s33
      %s50 = sphi 0, %s34
      %s56 = sphi 0, %s58
      %s59 = sphi 0, %s56
      %s60 = sphi 0, %s59
      %s76 = sphi 0, %s60
    $region4: #{tpu_custom_call.1} parent=1 // loop_header_branch
      %21 = sbr.rel (%p19) target = $region8
    $region5: #{tpu_custom_call.1} parent=1 // loop_body
      %s23 = ssub.s32 %s18, 1
      %s24 = ssub.s32 %s18, 2
      %s25 = sadd.s32 %s18, 1
      %s26 = sld [smem:[#allocation3 + %s18]]
      %s27 = sld [smem:[#allocation3 + %s25]]
      %s28 = ssub.s32 %s26, %s27
      %p29 = scmp.eq.s32.totalorder %s28, 0
      %s31 = sadd.s32 %s30, 1
      %s32 = scalar_select %p29, %s30, %s31
      %p35 = pneg %p29
      %p36 = scmp.eq.s32.totalorder %s18, 3
      %p37 = por %p35, %p36
      %p38 = scmp.ne.s32.totalorder %s30, %s33
      %p39 = scmp.eq.s32.totalorder %s18, 0
      %p40 = por %p38, %p39
      %p41 = scmp.ne.s32.totalorder %s30, %s33
      %p42 = scmp.eq.s32.totalorder %s23, 3
      %p43 = por %p41, %p42
      %p44 = scmp.ne.s32.totalorder %s33, %s34
      %p45 = scmp.eq.s32.totalorder %s23, 0
      %p46 = por %p44, %p45
      %p47 = scmp.ne.s32.totalorder %s33, %s34
      %p48 = scmp.eq.s32.totalorder %s24, 3
      %p49 = por %p47, %p48
      %p51 = scmp.ne.s32.totalorder %s34, %s50
      %p52 = scmp.eq.s32.totalorder %s24, 0
      %p53 = por %p51, %p52
      %s54 = ssub.s32 %s18, %s25
      %p55 = scmp.eq.s32.totalorder %s54, 0
      %s57 = sadd.s32 %s56, 1
      %s58 = scalar_select %p55, %s56, %s57
      %p61 = pneg %p55
      %p62 = scmp.eq.s32.totalorder %s18, 3
      %p63 = por %p61, %p62
      %p64 = scmp.ne.s32.totalorder %s56, %s59
      %p65 = scmp.eq.s32.totalorder %s18, 0
      %p66 = por %p64, %p65
      %p67 = scmp.ne.s32.totalorder %s56, %s59
      %p68 = scmp.eq.s32.totalorder %s23, 3
      %p69 = por %p67, %p68
      %p70 = scmp.ne.s32.totalorder %s59, %s60
      %p71 = scmp.eq.s32.totalorder %s23, 0
      %p72 = por %p70, %p71
      %p73 = scmp.ne.s32.totalorder %s59, %s60
      %p74 = scmp.eq.s32.totalorder %s24, 3
      %p75 = por %p73, %p74
      %p77 = scmp.ne.s32.totalorder %s60, %s76
      %p78 = scmp.eq.s32.totalorder %s24, 0
      %p79 = por %p77, %p78
      %p80 = scmp.le.s32.totalorder 1, %s18
      %p81 = scmp.lt.s32.totalorder %s18, 5
      %p82 = pnand %p80, %p81
      %p83 = pneg %p82
      // Predicated region
      $region9: #{tpu_custom_call.1} parent=5 // pred_check
        _
      $region10: #{tpu_custom_call.1} parent=5 // pred_check_branch
        %85 = sbr.rel (%p82) target = $region12
      $region11: #{tpu_custom_call.1} parent=5 // pred_region
        %s86 = ssub.s32 %s18, 1
      $region12: #{tpu_custom_call.1} parent=5 // pred_fallthru
        _
      %p87 = scmp.lt.s32.totalorder %s18, 4
      // Predicated region
      $region13: #{tpu_custom_call.1} parent=5 // pred_check
        %p88 = pneg %p87
      $region14: #{tpu_custom_call.1} parent=5 // pred_check_branch
        %90 = sbr.rel (%p88) target = $region16
      $region15: #{tpu_custom_call.1} parent=5 // pred_region
        // Predicated region
        $region17: #{tpu_custom_call.1} parent=15 // pred_check
          %p91 = pneg %p40
        $region18: #{tpu_custom_call.1} parent=15 // pred_check_branch
          %93 = sbr.rel (%p91) target = $region20
        $region19: #{tpu_custom_call.1} parent=15 // pred_region
          %s94 = sand.u32 %s30, 1
          %s95 = scalar_lea.sflag [#allocation5], %s94
          %s96 = sand.u32 %s30, 1
          %s97 = smul.addr %s96, 64
          %s98 = scalar_lea.vmem [#allocation4], %s97
          %s99 = sld [smem:[#allocation3 + %s18]]
          %s101 = ssub.s32 1024, 1024
          %102 = vsyncadd %s95, %s101
          %s103 = smul.addr %s99, 8
          %s104 = smul.addr %s103, 128
          %s105 = scalar_lea.hbm %s1, %s104
          %s106 = sshll.u32 %s98, 4
          %s107 = int_to_ptr.vmem [resolvable:$true] %s106
          %112 = dma.hbm_to_vmem [thread:$0]  %s105, 1024, %s107, %s95, 256, 256, 16
        $region20: #{tpu_custom_call.1} parent=15 // pred_fallthru
          _
      $region16: #{tpu_custom_call.1} parent=5 // pred_fallthru
        _
      %p113 = scmp.le.s32.totalorder 1, %s18
      %p114 = scmp.lt.s32.totalorder %s18, 5
      %p115 = pnand %p113, %p114
      %p116 = pneg %p115
      // Predicated region
      $region21: #{tpu_custom_call.1} parent=5 // pred_check
        _
      $region22: #{tpu_custom_call.1} parent=5 // pred_check_branch
        %118 = sbr.rel (%p115) target = $region24
      $region23: #{tpu_custom_call.1} parent=5 // pred_region
        %s119 = ssub.s32 %s18, 1
        %s120 = sand.u32 %s33, 1
        %s121 = scalar_lea.sflag [#allocation5], %s120
        %s122 = sand.u32 %s33, 1
        %s123 = smul.addr %s122, 64
        %s124 = scalar_lea.vmem [#allocation4], %s123
        // Predicated region
        $region25: #{tpu_custom_call.1} parent=23 // pred_check
          %p125 = pneg %p46
        $region26: #{tpu_custom_call.1} parent=23 // pred_check_branch
          %127 = sbr.rel (%p125) target = $region28
        $region27: #{tpu_custom_call.1} parent=23 // pred_region
          %128 = dma.done %s121, 1024
        $region28: #{tpu_custom_call.1} parent=23 // pred_fallthru
          _
        %s129 = sand.u32 %s33, 1
        %s130 = scalar_lea.sflag [#allocation5], %s129
        %s131 = sand.u32 %s33, 1
        %s132 = smul.addr %s131, 64
        %s133 = scalar_lea.vmem [#allocation4], %s132
        %p134 = pneg %p46
        %p135 = pneg %p43
        %p136 = pneg %p72
        %p137 = pneg %p69
        %s138 = sand.u32 %s59, 1
        %s139 = scalar_lea.sflag [#allocation6], %s138
        %s140 = sand.u32 %s59, 1
        %s141 = smul.addr %s140, 2
        %s142 = scalar_lea.vmem [#allocation7], %s141
        %s143 = sld [smem:[#allocation3 + %s23]]
        %v144 = vld [vmem:[%s124] sm:$0xff]
        %v145 = vld [vmem:[%s124 + $0x8] sm:$0xff]
        %v146 = vld [vmem:[%s124 + $0x10] sm:$0xff]
        %v147 = vld [vmem:[%s124 + $0x18] sm:$0xff]
        %v148 = vld [vmem:[%s124 + $0x20] sm:$0xff]
        %v149 = vld [vmem:[%s124 + $0x28] sm:$0xff]
        %v150 = vld [vmem:[%s124 + $0x30] sm:$0xff]
        %v151 = vld [vmem:[%s124 + $0x38] sm:$0xff]
        %v152 = vadd.f32 %v144, %v146
        %v153 = vadd.f32 %v152, %v148
        %v154 = vadd.f32 %v153, %v150
        %v155 = vrot.slane %v154, 4
        %v156 = vadd.f32 %v154, %v155
        %v157 = vrot.slane %v156, 2
        %v158 = vadd.f32 %v156, %v157
        %v159 = vrot.slane %v158, 1
        %v160 = vadd.f32 %v158, %v159
        %v161 = vadd.f32 %v145, %v147
        %v162 = vadd.f32 %v161, %v149
        %v163 = vadd.f32 %v162, %v151
        %v164 = vrot.slane %v163, 4
        %v165 = vadd.f32 %v163, %v164
        %v166 = vrot.slane %v165, 2
        %v167 = vadd.f32 %v165, %v166
        %v168 = vrot.slane %v167, 1
        %v169 = vadd.f32 %v167, %v168
        %v170 = vrcp.pop 32.0
        %v171 = vmul.f32 %v160, %v170
        %v172 = vmul.f32 %v169, %v170
        %v175 = vcombine.low %v171, %v172
        %v177 = vunpack.c.l.s4 1966171168
        %v178 = vunpack.c.0.s8 %v177
        %v179 = vlaneseq
        %v180 = vshrl.u32 %v179, 7
        %v181 = vsub.s32 %v178, %v180
        %v182 = vrot.slane %v175, %v181
        %v184 = vunpack.c.l.s4 1966171168
        %v185 = vunpack.c.0.s8 %v184
        %v186 = vlaneseq
        %v187 = vshrl.u32 %v186, 7
        %v188 = vsub.s32 %v185, %v187
        %v189 = vrot.slane %v182, %v188
        %v191 = vlaneseq
        %vm192 = vcmp.ge.s32.totalorder %v191, 0
        %vm193 = vcmp.lt.s32.totalorder %v191, 256
        %vm194 = vmand %vm192, %vm193
        %195 = vst.msk [vmem:[%s142] sm:$0x3] %vm194, %v189
        %s196 = sand.u32 %s59, 1
        %s197 = scalar_lea.sflag [#allocation6], %s196
        %s198 = sand.u32 %s59, 1
        %s199 = smul.addr %s198, 2
        %s200 = scalar_lea.vmem [#allocation7], %s199
        // Predicated region
        $region29: #{tpu_custom_call.1} parent=23 // pred_check
          %p201 = pneg %p69
        $region30: #{tpu_custom_call.1} parent=23 // pred_check_branch
          %203 = sbr.rel (%p201) target = $region32
        $region31: #{tpu_custom_call.1} parent=23 // pred_region
          %s205 = ssub.s32 32, 32
          %206 = vsyncadd %s197, %s205
          %s207 = smul.addr %s23, 2
          %s208 = smul.addr %s207, 16
          %s209 = scalar_lea.hbm %s2, %s208
          %s211 = sshll.u32 %s200, 4
          %s212 = int_to_ptr.vmem [resolvable:$true] %s211
          %214 = dma.vmem_to_hbm [thread:$0]  %s212, 32, %s209, %s197
        $region32: #{tpu_custom_call.1} parent=23 // pred_fallthru
          _
      $region24: #{tpu_custom_call.1} parent=5 // pred_fallthru
        _
      %p215 = scmp.le.s32.totalorder 2, %s18
      // Predicated region
      $region33: #{tpu_custom_call.1} parent=5 // pred_check
        %p216 = pneg %p215
      $region34: #{tpu_custom_call.1} parent=5 // pred_check_branch
        %218 = sbr.rel (%p216) target = $region36
      $region35: #{tpu_custom_call.1} parent=5 // pred_region
        %s219 = ssub.s32 %s18, 2
        // Predicated region
        $region37: #{tpu_custom_call.1} parent=35 // pred_check
          %p220 = pneg %p75
        $region38: #{tpu_custom_call.1} parent=35 // pred_check_branch
          %222 = sbr.rel (%p220) target = $region40
        $region39: #{tpu_custom_call.1} parent=35 // pred_region
          %s223 = sand.u32 %s60, 1
          %s224 = scalar_lea.sflag [#allocation6], %s223
          %s225 = sand.u32 %s60, 1
          %s226 = smul.addr %s225, 2
          %s227 = scalar_lea.vmem [#allocation7], %s226
          %228 = dma.done %s224, 32
        $region40: #{tpu_custom_call.1} parent=35 // pred_fallthru
          _
      $region36: #{tpu_custom_call.1} parent=5 // pred_fallthru
        _
    $region6: #{tpu_custom_call.1} parent=1 // loop_footer
      %s22 = sadd.s32 1, %s18
    $region7: #{tpu_custom_call.1} parent=1 // loop_footer_branch
      %17 = sbr.rel target = $region3
    $region8: #{tpu_custom_call.1} parent=1 // loop_exit
      _
    %229 = vsyncpa [#allocation5], 1
    %s230 = scalar_lea.sflag [#allocation5], 1
    %231 = vsyncpa %s230, 1
    %232 = vsyncpa [#allocation6], 1
    %s233 = scalar_lea.sflag [#allocation6], 1
    %234 = vsyncpa %s233, 1

</llo_original>
